<compile_context>
chip_gen: v6e
topology: v6e:2x2x1
jax: 0.10.0
libtpu: 0.0.40
codegen_flags: <defaults>
</compile_context>

<pallas_src>
import jax
import jax.numpy as jnp
from jax import lax
from jax.experimental import pallas as pl
from jax.experimental.pallas import tpu as pltpu

N_QUBITS = 4
LANES = 128        # lane width: batch minor axis
SUB_CHUNK = 8      # sublanes per compute chunk (one f32 vreg per row)
PARAM_PAD = 128    # packed parameter block length (71 values used)

# Static offsets into the packed parameter block (row-major (in, out) weights).
_OFF_W1, _OFF_B1 = 0, 16    # pre_net  Linear(4, 4)
_OFF_W2, _OFF_B2 = 20, 52   # post_net Linear(8, 4)
_OFF_W3, _OFF_B3 = 56, 68   # post_net Linear(4, 3)


def hybrid_kernel(x_ref, p_ref, o_ref):
    """x_ref: (4, St, 128) VMEM; p_ref: (128,) f32 SMEM; o_ref: (3, St, 128) VMEM."""
    # Hoist every SMEM parameter read out of the chunk loop (71 scalar loads once
    # per grid step instead of once per (8,128) chunk; JAX does not CSE these).
    w1 = [[p_ref[_OFF_W1 + i * 4 + o] for o in range(4)] for i in range(4)]
    b1 = [p_ref[_OFF_B1 + o] for o in range(4)]
    w2 = [[p_ref[_OFF_W2 + i * 4 + o] for o in range(4)] for i in range(8)]
    b2 = [p_ref[_OFF_B2 + o] for o in range(4)]
    w3 = [[p_ref[_OFF_W3 + i * 3 + o] for o in range(3)] for i in range(4)]
    b3 = [p_ref[_OFF_B3 + o] for o in range(3)]

    st = x_ref.shape[1]
    n_chunks = st // SUB_CHUNK   # St is a multiple of SUB_CHUNK by construction

    def chunk_body(c, carry):
        s0 = pl.multiple_of(c * SUB_CHUNK, SUB_CHUNK)
        # One full (8,128) vreg slab per input feature.
        xs = [x_ref[i, pl.ds(s0, SUB_CHUNK), :] for i in range(N_QUBITS)]

        # ---- quantum_circuit (exact analytic): <Z_k> = prod_{i<=k} cos(x_i) ----
        # TODO(synk): if a bundle dump shows cos lowering to a long VALU polynomial
        # and the kernel is still VALU-bound, swap in a bounded-range minimax poly.
        cs = [jnp.cos(v) for v in xs]
        q = [cs[0]]
        for i in range(1, N_QUBITS):
            q.append(q[-1] * cs[i])

        # ---- pre_net: Linear(4,4) + ReLU (unrolled VPU broadcast-FMAs) --------
        h1 = []
        for o in range(4):
            z = xs[0] * w1[0][o]
            for i in range(1, 4):
                z = z + xs[i] * w1[i][o]
            h1.append(jnp.maximum(z + b1[o], 0.0))

        # torch.cat((x_classical, q_out), dim=1) == slabs [h1_0..3, q_0..3]
        comb = h1 + q

        # ---- post_net[0:2]: Linear(8,4) + ReLU ---------------------------------
        h2 = []
        for o in range(4):
            z = comb[0] * w2[0][o]
            for i in range(1, 8):
                z = z + comb[i] * w2[i][o]
            h2.append(jnp.maximum(z + b2[o], 0.0))

        # ---- post_net[2]: Linear(4,3) -> full-width unmasked (8,128) stores ----
        for o in range(3):
            z = h2[0] * w3[0][o]
            for i in range(1, 4):
                z = z + h2[i] * w3[i][o]
            o_ref[o, pl.ds(s0, SUB_CHUNK), :] = (z + b3[o]).astype(o_ref.dtype)
        return carry

    lax.fori_loop(0, n_chunks, chunk_body, 0, unroll=min(8, n_chunks))


def _round_up(n, m):
    return (n + m - 1) // m * m


def pack_params(params):
    """Flatten (w1, b1, w2, b2, w3, b3) into one (PARAM_PAD,) f32 block."""
    w1, b1, w2, b2, w3, b3 = params
    flat = jnp.concatenate([w1.reshape(-1), b1.reshape(-1),
                            w2.reshape(-1), b2.reshape(-1),
                            w3.reshape(-1), b3.reshape(-1)]).astype(jnp.float32)
    return jnp.pad(flat, (0, PARAM_PAD - flat.shape[0]))


def hybrid_forward_fm(x_fm, packed_params, *, block_sublanes=1024):
    """Feature-major entry point: x_fm (4, B) f32 -> (3, B) f32. No transposes."""
    f, b = x_fm.shape
    assert f == N_QUBITS

    s_need = pl.cdiv(b, LANES)                               # sublane rows needed
    st = min(_round_up(block_sublanes, SUB_CHUNK), _round_up(s_need, SUB_CHUNK))
    s_pad = _round_up(s_need, st)

    # v7x: keep grid >= 2 so ("parallel",) can shard the batch across both TCs.
    if s_pad // st < 2 and st > SUB_CHUNK:
        st = _round_up(st // 2, SUB_CHUNK)
        s_pad = _round_up(s_need, st)

    b_pad = s_pad * LANES
    x3 = jnp.pad(x_fm.astype(jnp.float32), ((0, 0), (0, b_pad - b)))
    x3 = x3.reshape(N_QUBITS, s_pad, LANES)                  # free contiguous reshape

    out3 = pl.pallas_call(
        hybrid_kernel,
        out_shape=jax.ShapeDtypeStruct((3, s_pad, LANES), jnp.float32),
        grid=(s_pad // st,),
        in_specs=[
            pl.BlockSpec((N_QUBITS, st, LANES), lambda i: (0, i, 0)),  # batch tile
            pl.BlockSpec(memory_space=pltpu.MemorySpace.SMEM),         # packed params
        ],
        out_specs=pl.BlockSpec((3, st, LANES), lambda i: (0, i, 0)),
        compiler_params=pltpu.CompilerParams(
            dimension_semantics=("parallel",)),
    )(x3, packed_params)

    return out3.reshape(3, b_pad)[:, :b]


def hybrid_forward(x, params, *, block_sublanes=1024):
    """Compatibility wrapper: x (B, 4) f32 -> (B, 3) f32.

    NOTE: for end-to-end HBM-roofline performance keep activations feature-major
    across calls and use hybrid_forward_fm directly (avoids the two transposes).
    """
    p = pack_params(params)
    return hybrid_forward_fm(x.astype(jnp.float32).T, p,
                             block_sublanes=block_sublanes).T


def init_params(key):
    """Deterministic PyTorch-Linear-style init; weights stored as (in, out)."""
    ks = jax.random.split(key, 3)

    def lin(k, fan_in, fan_out):
        kw, kb = jax.random.split(k)
        bound = 1.0 / float(fan_in) ** 0.5
        w = jax.random.uniform(kw, (fan_in, fan_out), jnp.float32, -bound, bound)
        b = jax.random.uniform(kb, (fan_out,), jnp.float32, -bound, bound)
        return w, b

    w1, b1 = lin(ks[0], 4, 4)     # pre_net Linear(4, 4)
    w2, b2 = lin(ks[1], 8, 4)     # post_net Linear(8, 4)
    w3, b3 = lin(ks[2], 4, 3)     # post_net Linear(4, 3)
    return (w1, b1, w2, b2, w3, b3)


def reference_forward(x, params):
    """Pure-JAX reference mirroring the PyTorch forward (for verification)."""
    w1, b1, w2, b2, w3, b3 = params
    q = jnp.cumprod(jnp.cos(x), axis=1)                    # quantum_circuit <Z_k>
    h1 = jax.nn.relu(x @ w1 + b1)                          # pre_net
    comb = jnp.concatenate([h1, q], axis=1)                # torch.cat
    h2 = jax.nn.relu(comb @ w2 + b2)                       # post_net[0:2]
    return h2 @ w3 + b3                                    # post_net[2]


if __name__ == "__main__":
    key = jax.random.PRNGKey(0)
    k_x, k_x2, k_p = jax.random.split(key, 3)

    params = init_params(k_p)

    # Small batch: single grid step, single (8,128) chunk.
    B = 8
    x = jax.random.normal(k_x, (B, N_QUBITS), jnp.float32)
    out = jax.block_until_ready(hybrid_forward(x, params))
    ref = reference_forward(x, params)
    assert out.shape == (B, 3)
    assert jnp.allclose(out, ref, atol=1e-5, rtol=1e-4), "mismatch vs reference (B=8)"

    # Larger ragged batch: multi-step grid + multi-chunk inner loop (default tile).
    B2 = 2500
    x2 = jax.random.normal(k_x2, (B2, N_QUBITS), jnp.float32)
    out2 = jax.block_until_ready(hybrid_forward(x2, params))
    ref2 = reference_forward(x2, params)
    assert out2.shape == (B2, 3)
    assert jnp.allclose(out2, ref2, atol=1e-5, rtol=1e-4), "mismatch vs reference (B=2500)"

    # Same batch with a tiny tile: exercises a longer pipelined grid (3 steps).
    out3 = jax.block_until_ready(hybrid_forward(x2, params, block_sublanes=8))
    assert jnp.allclose(out3, ref2, atol=1e-5, rtol=1e-4), "mismatch vs reference (tiled)"

    print("KERNEL_OK")
</pallas_src>

<mosaic_0001>
module attributes {stable_mosaic.version = 11 : i64} {
  func.func @hybrid_kernel(%arg0: i32, %arg1: memref<4x8x128xf32, #tpu.memory_space<vmem>>, %arg2: memref<128xf32, #tpu.memory_space<smem>>, %arg3: memref<3x8x128xf32, #tpu.memory_space<vmem>>) attributes {dimension_semantics = [#tpu.dimension_semantics<parallel>], iteration_bounds = array<i64: 1>, scalar_prefetch = 0 : i64, scratch_operands = 0 : i64, tpu.core_type = #tpu.core_type<tc>, window_params = [{transform_indices = @transform_0, window_bounds = array<i64: 4, 8, 128>}, {transform_indices = @transform_1, window_bounds = array<i64: 128>}, {transform_indices = @transform_2, window_bounds = array<i64: 3, 8, 128>}]} {
    %c0 = arith.constant 0 : index
    %0 = memref.load %arg2[%c0] : memref<128xf32, #tpu.memory_space<smem>>
    %c1 = arith.constant 1 : index
    %1 = memref.load %arg2[%c1] : memref<128xf32, #tpu.memory_space<smem>>
    %c2 = arith.constant 2 : index
    %2 = memref.load %arg2[%c2] : memref<128xf32, #tpu.memory_space<smem>>
    %c3 = arith.constant 3 : index
    %3 = memref.load %arg2[%c3] : memref<128xf32, #tpu.memory_space<smem>>
    %c4 = arith.constant 4 : index
    %4 = memref.load %arg2[%c4] : memref<128xf32, #tpu.memory_space<smem>>
    %c5 = arith.constant 5 : index
    %5 = memref.load %arg2[%c5] : memref<128xf32, #tpu.memory_space<smem>>
    %c6 = arith.constant 6 : index
    %6 = memref.load %arg2[%c6] : memref<128xf32, #tpu.memory_space<smem>>
    %c7 = arith.constant 7 : index
    %7 = memref.load %arg2[%c7] : memref<128xf32, #tpu.memory_space<smem>>
    %c8 = arith.constant 8 : index
    %8 = memref.load %arg2[%c8] : memref<128xf32, #tpu.memory_space<smem>>
    %c9 = arith.constant 9 : index
    %9 = memref.load %arg2[%c9] : memref<128xf32, #tpu.memory_space<smem>>
    %c10 = arith.constant 10 : index
    %10 = memref.load %arg2[%c10] : memref<128xf32, #tpu.memory_space<smem>>
    %c11 = arith.constant 11 : index
    %11 = memref.load %arg2[%c11] : memref<128xf32, #tpu.memory_space<smem>>
    %c12 = arith.constant 12 : index
    %12 = memref.load %arg2[%c12] : memref<128xf32, #tpu.memory_space<smem>>
    %c13 = arith.constant 13 : index
    %13 = memref.load %arg2[%c13] : memref<128xf32, #tpu.memory_space<smem>>
    %c14 = arith.constant 14 : index
    %14 = memref.load %arg2[%c14] : memref<128xf32, #tpu.memory_space<smem>>
    %c15 = arith.constant 15 : index
    %15 = memref.load %arg2[%c15] : memref<128xf32, #tpu.memory_space<smem>>
    %c16 = arith.constant 16 : index
    %16 = memref.load %arg2[%c16] : memref<128xf32, #tpu.memory_space<smem>>
    %c17 = arith.constant 17 : index
    %17 = memref.load %arg2[%c17] : memref<128xf32, #tpu.memory_space<smem>>
    %c18 = arith.constant 18 : index
    %18 = memref.load %arg2[%c18] : memref<128xf32, #tpu.memory_space<smem>>
    %c19 = arith.constant 19 : index
    %19 = memref.load %arg2[%c19] : memref<128xf32, #tpu.memory_space<smem>>
    %c20 = arith.constant 20 : index
    %20 = memref.load %arg2[%c20] : memref<128xf32, #tpu.memory_space<smem>>
    %c21 = arith.constant 21 : index
    %21 = memref.load %arg2[%c21] : memref<128xf32, #tpu.memory_space<smem>>
    %c22 = arith.constant 22 : index
    %22 = memref.load %arg2[%c22] : memref<128xf32, #tpu.memory_space<smem>>
    %c23 = arith.constant 23 : index
    %23 = memref.load %arg2[%c23] : memref<128xf32, #tpu.memory_space<smem>>
    %c24 = arith.constant 24 : index
    %24 = memref.load %arg2[%c24] : memref<128xf32, #tpu.memory_space<smem>>
    %c25 = arith.constant 25 : index
    %25 = memref.load %arg2[%c25] : memref<128xf32, #tpu.memory_space<smem>>
    %c26 = arith.constant 26 : index
    %26 = memref.load %arg2[%c26] : memref<128xf32, #tpu.memory_space<smem>>
    %c27 = arith.constant 27 : index
    %27 = memref.load %arg2[%c27] : memref<128xf32, #tpu.memory_space<smem>>
    %c28 = arith.constant 28 : index
    %28 = memref.load %arg2[%c28] : memref<128xf32, #tpu.memory_space<smem>>
    %c29 = arith.constant 29 : index
    %29 = memref.load %arg2[%c29] : memref<128xf32, #tpu.memory_space<smem>>
    %c30 = arith.constant 30 : index
    %30 = memref.load %arg2[%c30] : memref<128xf32, #tpu.memory_space<smem>>
    %c31 = arith.constant 31 : index
    %31 = memref.load %arg2[%c31] : memref<128xf32, #tpu.memory_space<smem>>
    %c32 = arith.constant 32 : index
    %32 = memref.load %arg2[%c32] : memref<128xf32, #tpu.memory_space<smem>>
    %c33 = arith.constant 33 : index
    %33 = memref.load %arg2[%c33] : memref<128xf32, #tpu.memory_space<smem>>
    %c34 = arith.constant 34 : index
    %34 = memref.load %arg2[%c34] : memref<128xf32, #tpu.memory_space<smem>>
    %c35 = arith.constant 35 : index
    %35 = memref.load %arg2[%c35] : memref<128xf32, #tpu.memory_space<smem>>
    %c36 = arith.constant 36 : index
    %36 = memref.load %arg2[%c36] : memref<128xf32, #tpu.memory_space<smem>>
    %c37 = arith.constant 37 : index
    %37 = memref.load %arg2[%c37] : memref<128xf32, #tpu.memory_space<smem>>
    %c38 = arith.constant 38 : index
    %38 = memref.load %arg2[%c38] : memref<128xf32, #tpu.memory_space<smem>>
    %c39 = arith.constant 39 : index
    %39 = memref.load %arg2[%c39] : memref<128xf32, #tpu.memory_space<smem>>
    %c40 = arith.constant 40 : index
    %40 = memref.load %arg2[%c40] : memref<128xf32, #tpu.memory_space<smem>>
    %c41 = arith.constant 41 : index
    %41 = memref.load %arg2[%c41] : memref<128xf32, #tpu.memory_space<smem>>
    %c42 = arith.constant 42 : index
    %42 = memref.load %arg2[%c42] : memref<128xf32, #tpu.memory_space<smem>>
    %c43 = arith.constant 43 : index
    %43 = memref.load %arg2[%c43] : memref<128xf32, #tpu.memory_space<smem>>
    %c44 = arith.constant 44 : index
    %44 = memref.load %arg2[%c44] : memref<128xf32, #tpu.memory_space<smem>>
    %c45 = arith.constant 45 : index
    %45 = memref.load %arg2[%c45] : memref<128xf32, #tpu.memory_space<smem>>
    %c46 = arith.constant 46 : index
    %46 = memref.load %arg2[%c46] : memref<128xf32, #tpu.memory_space<smem>>
    %c47 = arith.constant 47 : index
    %47 = memref.load %arg2[%c47] : memref<128xf32, #tpu.memory_space<smem>>
    %c48 = arith.constant 48 : index
    %48 = memref.load %arg2[%c48] : memref<128xf32, #tpu.memory_space<smem>>
    %c49 = arith.constant 49 : index
    %49 = memref.load %arg2[%c49] : memref<128xf32, #tpu.memory_space<smem>>
    %c50 = arith.constant 50 : index
    %50 = memref.load %arg2[%c50] : memref<128xf32, #tpu.memory_space<smem>>
    %c51 = arith.constant 51 : index
    %51 = memref.load %arg2[%c51] : memref<128xf32, #tpu.memory_space<smem>>
    %c52 = arith.constant 52 : index
    %52 = memref.load %arg2[%c52] : memref<128xf32, #tpu.memory_space<smem>>
    %c53 = arith.constant 53 : index
    %53 = memref.load %arg2[%c53] : memref<128xf32, #tpu.memory_space<smem>>
    %c54 = arith.constant 54 : index
    %54 = memref.load %arg2[%c54] : memref<128xf32, #tpu.memory_space<smem>>
    %c55 = arith.constant 55 : index
    %55 = memref.load %arg2[%c55] : memref<128xf32, #tpu.memory_space<smem>>
    %c56 = arith.constant 56 : index
    %56 = memref.load %arg2[%c56] : memref<128xf32, #tpu.memory_space<smem>>
    %c57 = arith.constant 57 : index
    %57 = memref.load %arg2[%c57] : memref<128xf32, #tpu.memory_space<smem>>
    %c58 = arith.constant 58 : index
    %58 = memref.load %arg2[%c58] : memref<128xf32, #tpu.memory_space<smem>>
    %c59 = arith.constant 59 : index
    %59 = memref.load %arg2[%c59] : memref<128xf32, #tpu.memory_space<smem>>
    %c60 = arith.constant 60 : index
    %60 = memref.load %arg2[%c60] : memref<128xf32, #tpu.memory_space<smem>>
    %c61 = arith.constant 61 : index
    %61 = memref.load %arg2[%c61] : memref<128xf32, #tpu.memory_space<smem>>
    %c62 = arith.constant 62 : index
    %62 = memref.load %arg2[%c62] : memref<128xf32, #tpu.memory_space<smem>>
    %c63 = arith.constant 63 : index
    %63 = memref.load %arg2[%c63] : memref<128xf32, #tpu.memory_space<smem>>
    %c64 = arith.constant 64 : index
    %64 = memref.load %arg2[%c64] : memref<128xf32, #tpu.memory_space<smem>>
    %c65 = arith.constant 65 : index
    %65 = memref.load %arg2[%c65] : memref<128xf32, #tpu.memory_space<smem>>
    %c66 = arith.constant 66 : index
    %66 = memref.load %arg2[%c66] : memref<128xf32, #tpu.memory_space<smem>>
    %c67 = arith.constant 67 : index
    %67 = memref.load %arg2[%c67] : memref<128xf32, #tpu.memory_space<smem>>
    %c68 = arith.constant 68 : index
    %68 = memref.load %arg2[%c68] : memref<128xf32, #tpu.memory_space<smem>>
    %c69 = arith.constant 69 : index
    %69 = memref.load %arg2[%c69] : memref<128xf32, #tpu.memory_space<smem>>
    %c70 = arith.constant 70 : index
    %70 = memref.load %arg2[%c70] : memref<128xf32, #tpu.memory_space<smem>>
    %c0_i32 = arith.constant 0 : i32
    %c8_i32 = arith.constant 8 : i32
    %71 = arith.muli %c0_i32, %c8_i32 : i32
    %72 = tpu.assume_multiple %71, 8 : i32
    %c0_0 = arith.constant 0 : index
    %73 = arith.index_cast %72 : i32 to index
    %c0_1 = arith.constant 0 : index
    %74 = vector.load %arg1[%c0_0, %73, %c0_1] : memref<4x8x128xf32, #tpu.memory_space<vmem>>, vector<1x8x128xf32>
    %75 = vector.shape_cast %74 : vector<1x8x128xf32> to vector<8x128xf32>
    %c1_2 = arith.constant 1 : index
    %76 = arith.index_cast %72 : i32 to index
    %c0_3 = arith.constant 0 : index
    %77 = vector.load %arg1[%c1_2, %76, %c0_3] : memref<4x8x128xf32, #tpu.memory_space<vmem>>, vector<1x8x128xf32>
    %78 = vector.shape_cast %77 : vector<1x8x128xf32> to vector<8x128xf32>
    %c2_4 = arith.constant 2 : index
    %79 = arith.index_cast %72 : i32 to index
    %c0_5 = arith.constant 0 : index
    %80 = vector.load %arg1[%c2_4, %79, %c0_5] : memref<4x8x128xf32, #tpu.memory_space<vmem>>, vector<1x8x128xf32>
    %81 = vector.shape_cast %80 : vector<1x8x128xf32> to vector<8x128xf32>
    %c3_6 = arith.constant 3 : index
    %82 = arith.index_cast %72 : i32 to index
    %c0_7 = arith.constant 0 : index
    %83 = vector.load %arg1[%c3_6, %82, %c0_7] : memref<4x8x128xf32, #tpu.memory_space<vmem>>, vector<1x8x128xf32>
    %84 = vector.shape_cast %83 : vector<1x8x128xf32> to vector<8x128xf32>
    %85 = math.cos %75 : vector<8x128xf32>
    %86 = math.cos %78 : vector<8x128xf32>
    %87 = math.cos %81 : vector<8x128xf32>
    %88 = math.cos %84 : vector<8x128xf32>
    %89 = arith.mulf %85, %86 : vector<8x128xf32>
    %90 = arith.mulf %89, %87 : vector<8x128xf32>
    %91 = arith.mulf %90, %88 : vector<8x128xf32>
    %92 = vector.broadcast %0 : f32 to vector<8x128xf32>
    %93 = arith.mulf %75, %92 : vector<8x128xf32>
    %94 = vector.broadcast %4 : f32 to vector<8x128xf32>
    %95 = arith.mulf %78, %94 : vector<8x128xf32>
    %96 = arith.addf %93, %95 : vector<8x128xf32>
    %97 = vector.broadcast %8 : f32 to vector<8x128xf32>
    %98 = arith.mulf %81, %97 : vector<8x128xf32>
    %99 = arith.addf %96, %98 : vector<8x128xf32>
    %100 = vector.broadcast %12 : f32 to vector<8x128xf32>
    %101 = arith.mulf %84, %100 : vector<8x128xf32>
    %102 = arith.addf %99, %101 : vector<8x128xf32>
    %103 = vector.broadcast %16 : f32 to vector<8x128xf32>
    %104 = arith.addf %102, %103 : vector<8x128xf32>
    %cst = arith.constant 0.000000e+00 : f32
    %105 = vector.broadcast %cst : f32 to vector<8x128xf32>
    %106 = arith.maximumf %104, %105 : vector<8x128xf32>
    %107 = vector.broadcast %1 : f32 to vector<8x128xf32>
    %108 = arith.mulf %75, %107 : vector<8x128xf32>
    %109 = vector.broadcast %5 : f32 to vector<8x128xf32>
    %110 = arith.mulf %78, %109 : vector<8x128xf32>
    %111 = arith.addf %108, %110 : vector<8x128xf32>
    %112 = vector.broadcast %9 : f32 to vector<8x128xf32>
    %113 = arith.mulf %81, %112 : vector<8x128xf32>
    %114 = arith.addf %111, %113 : vector<8x128xf32>
    %115 = vector.broadcast %13 : f32 to vector<8x128xf32>
    %116 = arith.mulf %84, %115 : vector<8x128xf32>
    %117 = arith.addf %114, %116 : vector<8x128xf32>
    %118 = vector.broadcast %17 : f32 to vector<8x128xf32>
    %119 = arith.addf %117, %118 : vector<8x128xf32>
    %cst_8 = arith.constant 0.000000e+00 : f32
    %120 = vector.broadcast %cst_8 : f32 to vector<8x128xf32>
    %121 = arith.maximumf %119, %120 : vector<8x128xf32>
    %122 = vector.broadcast %2 : f32 to vector<8x128xf32>
    %123 = arith.mulf %75, %122 : vector<8x128xf32>
    %124 = vector.broadcast %6 : f32 to vector<8x128xf32>
    %125 = arith.mulf %78, %124 : vector<8x128xf32>
    %126 = arith.addf %123, %125 : vector<8x128xf32>
    %127 = vector.broadcast %10 : f32 to vector<8x128xf32>
    %128 = arith.mulf %81, %127 : vector<8x128xf32>
    %129 = arith.addf %126, %128 : vector<8x128xf32>
    %130 = vector.broadcast %14 : f32 to vector<8x128xf32>
    %131 = arith.mulf %84, %130 : vector<8x128xf32>
    %132 = arith.addf %129, %131 : vector<8x128xf32>
    %133 = vector.broadcast %18 : f32 to vector<8x128xf32>
    %134 = arith.addf %132, %133 : vector<8x128xf32>
    %cst_9 = arith.constant 0.000000e+00 : f32
    %135 = vector.broadcast %cst_9 : f32 to vector<8x128xf32>
    %136 = arith.maximumf %134, %135 : vector<8x128xf32>
    %137 = vector.broadcast %3 : f32 to vector<8x128xf32>
    %138 = arith.mulf %75, %137 : vector<8x128xf32>
    %139 = vector.broadcast %7 : f32 to vector<8x128xf32>
    %140 = arith.mulf %78, %139 : vector<8x128xf32>
    %141 = arith.addf %138, %140 : vector<8x128xf32>
    %142 = vector.broadcast %11 : f32 to vector<8x128xf32>
    %143 = arith.mulf %81, %142 : vector<8x128xf32>
    %144 = arith.addf %141, %143 : vector<8x128xf32>
    %145 = vector.broadcast %15 : f32 to vector<8x128xf32>
    %146 = arith.mulf %84, %145 : vector<8x128xf32>
    %147 = arith.addf %144, %146 : vector<8x128xf32>
    %148 = vector.broadcast %19 : f32 to vector<8x128xf32>
    %149 = arith.addf %147, %148 : vector<8x128xf32>
    %cst_10 = arith.constant 0.000000e+00 : f32
    %150 = vector.broadcast %cst_10 : f32 to vector<8x128xf32>
    %151 = arith.maximumf %149, %150 : vector<8x128xf32>
    %152 = vector.broadcast %20 : f32 to vector<8x128xf32>
    %153 = arith.mulf %106, %152 : vector<8x128xf32>
    %154 = vector.broadcast %24 : f32 to vector<8x128xf32>
    %155 = arith.mulf %121, %154 : vector<8x128xf32>
    %156 = arith.addf %153, %155 : vector<8x128xf32>
    %157 = vector.broadcast %28 : f32 to vector<8x128xf32>
    %158 = arith.mulf %136, %157 : vector<8x128xf32>
    %159 = arith.addf %156, %158 : vector<8x128xf32>
    %160 = vector.broadcast %32 : f32 to vector<8x128xf32>
    %161 = arith.mulf %151, %160 : vector<8x128xf32>
    %162 = arith.addf %159, %161 : vector<8x128xf32>
    %163 = vector.broadcast %36 : f32 to vector<8x128xf32>
    %164 = arith.mulf %85, %163 : vector<8x128xf32>
    %165 = arith.addf %162, %164 : vector<8x128xf32>
    %166 = vector.broadcast %40 : f32 to vector<8x128xf32>
    %167 = arith.mulf %89, %166 : vector<8x128xf32>
    %168 = arith.addf %165, %167 : vector<8x128xf32>
    %169 = vector.broadcast %44 : f32 to vector<8x128xf32>
    %170 = arith.mulf %90, %169 : vector<8x128xf32>
    %171 = arith.addf %168, %170 : vector<8x128xf32>
    %172 = vector.broadcast %48 : f32 to vector<8x128xf32>
    %173 = arith.mulf %91, %172 : vector<8x128xf32>
    %174 = arith.addf %171, %173 : vector<8x128xf32>
    %175 = vector.broadcast %52 : f32 to vector<8x128xf32>
    %176 = arith.addf %174, %175 : vector<8x128xf32>
    %cst_11 = arith.constant 0.000000e+00 : f32
    %177 = vector.broadcast %cst_11 : f32 to vector<8x128xf32>
    %178 = arith.maximumf %176, %177 : vector<8x128xf32>
    %179 = vector.broadcast %21 : f32 to vector<8x128xf32>
    %180 = arith.mulf %106, %179 : vector<8x128xf32>
    %181 = vector.broadcast %25 : f32 to vector<8x128xf32>
    %182 = arith.mulf %121, %181 : vector<8x128xf32>
    %183 = arith.addf %180, %182 : vector<8x128xf32>
    %184 = vector.broadcast %29 : f32 to vector<8x128xf32>
    %185 = arith.mulf %136, %184 : vector<8x128xf32>
    %186 = arith.addf %183, %185 : vector<8x128xf32>
    %187 = vector.broadcast %33 : f32 to vector<8x128xf32>
    %188 = arith.mulf %151, %187 : vector<8x128xf32>
    %189 = arith.addf %186, %188 : vector<8x128xf32>
    %190 = vector.broadcast %37 : f32 to vector<8x128xf32>
    %191 = arith.mulf %85, %190 : vector<8x128xf32>
    %192 = arith.addf %189, %191 : vector<8x128xf32>
    %193 = vector.broadcast %41 : f32 to vector<8x128xf32>
    %194 = arith.mulf %89, %193 : vector<8x128xf32>
    %195 = arith.addf %192, %194 : vector<8x128xf32>
    %196 = vector.broadcast %45 : f32 to vector<8x128xf32>
    %197 = arith.mulf %90, %196 : vector<8x128xf32>
    %198 = arith.addf %195, %197 : vector<8x128xf32>
    %199 = vector.broadcast %49 : f32 to vector<8x128xf32>
    %200 = arith.mulf %91, %199 : vector<8x128xf32>
    %201 = arith.addf %198, %200 : vector<8x128xf32>
    %202 = vector.broadcast %53 : f32 to vector<8x128xf32>
    %203 = arith.addf %201, %202 : vector<8x128xf32>
    %cst_12 = arith.constant 0.000000e+00 : f32
    %204 = vector.broadcast %cst_12 : f32 to vector<8x128xf32>
    %205 = arith.maximumf %203, %204 : vector<8x128xf32>
    %206 = vector.broadcast %22 : f32 to vector<8x128xf32>
    %207 = arith.mulf %106, %206 : vector<8x128xf32>
    %208 = vector.broadcast %26 : f32 to vector<8x128xf32>
    %209 = arith.mulf %121, %208 : vector<8x128xf32>
    %210 = arith.addf %207, %209 : vector<8x128xf32>
    %211 = vector.broadcast %30 : f32 to vector<8x128xf32>
    %212 = arith.mulf %136, %211 : vector<8x128xf32>
    %213 = arith.addf %210, %212 : vector<8x128xf32>
    %214 = vector.broadcast %34 : f32 to vector<8x128xf32>
    %215 = arith.mulf %151, %214 : vector<8x128xf32>
    %216 = arith.addf %213, %215 : vector<8x128xf32>
    %217 = vector.broadcast %38 : f32 to vector<8x128xf32>
    %218 = arith.mulf %85, %217 : vector<8x128xf32>
    %219 = arith.addf %216, %218 : vector<8x128xf32>
    %220 = vector.broadcast %42 : f32 to vector<8x128xf32>
    %221 = arith.mulf %89, %220 : vector<8x128xf32>
    %222 = arith.addf %219, %221 : vector<8x128xf32>
    %223 = vector.broadcast %46 : f32 to vector<8x128xf32>
    %224 = arith.mulf %90, %223 : vector<8x128xf32>
    %225 = arith.addf %222, %224 : vector<8x128xf32>
    %226 = vector.broadcast %50 : f32 to vector<8x128xf32>
    %227 = arith.mulf %91, %226 : vector<8x128xf32>
    %228 = arith.addf %225, %227 : vector<8x128xf32>
    %229 = vector.broadcast %54 : f32 to vector<8x128xf32>
    %230 = arith.addf %228, %229 : vector<8x128xf32>
    %cst_13 = arith.constant 0.000000e+00 : f32
    %231 = vector.broadcast %cst_13 : f32 to vector<8x128xf32>
    %232 = arith.maximumf %230, %231 : vector<8x128xf32>
    %233 = vector.broadcast %23 : f32 to vector<8x128xf32>
    %234 = arith.mulf %106, %233 : vector<8x128xf32>
    %235 = vector.broadcast %27 : f32 to vector<8x128xf32>
    %236 = arith.mulf %121, %235 : vector<8x128xf32>
    %237 = arith.addf %234, %236 : vector<8x128xf32>
    %238 = vector.broadcast %31 : f32 to vector<8x128xf32>
    %239 = arith.mulf %136, %238 : vector<8x128xf32>
    %240 = arith.addf %237, %239 : vector<8x128xf32>
    %241 = vector.broadcast %35 : f32 to vector<8x128xf32>
    %242 = arith.mulf %151, %241 : vector<8x128xf32>
    %243 = arith.addf %240, %242 : vector<8x128xf32>
    %244 = vector.broadcast %39 : f32 to vector<8x128xf32>
    %245 = arith.mulf %85, %244 : vector<8x128xf32>
    %246 = arith.addf %243, %245 : vector<8x128xf32>
    %247 = vector.broadcast %43 : f32 to vector<8x128xf32>
    %248 = arith.mulf %89, %247 : vector<8x128xf32>
    %249 = arith.addf %246, %248 : vector<8x128xf32>
    %250 = vector.broadcast %47 : f32 to vector<8x128xf32>
    %251 = arith.mulf %90, %250 : vector<8x128xf32>
    %252 = arith.addf %249, %251 : vector<8x128xf32>
    %253 = vector.broadcast %51 : f32 to vector<8x128xf32>
    %254 = arith.mulf %91, %253 : vector<8x128xf32>
    %255 = arith.addf %252, %254 : vector<8x128xf32>
    %256 = vector.broadcast %55 : f32 to vector<8x128xf32>
    %257 = arith.addf %255, %256 : vector<8x128xf32>
    %cst_14 = arith.constant 0.000000e+00 : f32
    %258 = vector.broadcast %cst_14 : f32 to vector<8x128xf32>
    %259 = arith.maximumf %257, %258 : vector<8x128xf32>
    %260 = vector.broadcast %56 : f32 to vector<8x128xf32>
    %261 = arith.mulf %178, %260 : vector<8x128xf32>
    %262 = vector.broadcast %59 : f32 to vector<8x128xf32>
    %263 = arith.mulf %205, %262 : vector<8x128xf32>
    %264 = arith.addf %261, %263 : vector<8x128xf32>
    %265 = vector.broadcast %62 : f32 to vector<8x128xf32>
    %266 = arith.mulf %232, %265 : vector<8x128xf32>
    %267 = arith.addf %264, %266 : vector<8x128xf32>
    %268 = vector.broadcast %65 : f32 to vector<8x128xf32>
    %269 = arith.mulf %259, %268 : vector<8x128xf32>
    %270 = arith.addf %267, %269 : vector<8x128xf32>
    %271 = vector.broadcast %68 : f32 to vector<8x128xf32>
    %272 = arith.addf %270, %271 : vector<8x128xf32>
    %c0_15 = arith.constant 0 : index
    %273 = arith.index_cast %72 : i32 to index
    %c0_16 = arith.constant 0 : index
    %274 = vector.load %arg3[%c0_15, %273, %c0_16] : memref<3x8x128xf32, #tpu.memory_space<vmem>>, vector<1x8x128xf32>
    %275 = vector.shape_cast %274 : vector<1x8x128xf32> to vector<8x128xf32>
    %276 = vector.shape_cast %272 : vector<8x128xf32> to vector<1x8x128xf32>
    tpu.vector_store %arg3[%c0_15, %273, %c0_16], %276 {strides = array<i32>} : memref<3x8x128xf32, #tpu.memory_space<vmem>>, vector<1x8x128xf32>,
    %277 = vector.broadcast %57 : f32 to vector<8x128xf32>
    %278 = arith.mulf %178, %277 : vector<8x128xf32>
    %279 = vector.broadcast %60 : f32 to vector<8x128xf32>
    %280 = arith.mulf %205, %279 : vector<8x128xf32>
    %281 = arith.addf %278, %280 : vector<8x128xf32>
    %282 = vector.broadcast %63 : f32 to vector<8x128xf32>
    %283 = arith.mulf %232, %282 : vector<8x128xf32>
    %284 = arith.addf %281, %283 : vector<8x128xf32>
    %285 = vector.broadcast %66 : f32 to vector<8x128xf32>
    %286 = arith.mulf %259, %285 : vector<8x128xf32>
    %287 = arith.addf %284, %286 : vector<8x128xf32>
    %288 = vector.broadcast %69 : f32 to vector<8x128xf32>
    %289 = arith.addf %287, %288 : vector<8x128xf32>
    %c1_17 = arith.constant 1 : index
    %290 = arith.index_cast %72 : i32 to index
    %c0_18 = arith.constant 0 : index
    %291 = vector.load %arg3[%c1_17, %290, %c0_18] : memref<3x8x128xf32, #tpu.memory_space<vmem>>, vector<1x8x128xf32>
    %292 = vector.shape_cast %291 : vector<1x8x128xf32> to vector<8x128xf32>
    %293 = vector.shape_cast %289 : vector<8x128xf32> to vector<1x8x128xf32>
    tpu.vector_store %arg3[%c1_17, %290, %c0_18], %293 {strides = array<i32>} : memref<3x8x128xf32, #tpu.memory_space<vmem>>, vector<1x8x128xf32>,
    %294 = vector.broadcast %58 : f32 to vector<8x128xf32>
    %295 = arith.mulf %178, %294 : vector<8x128xf32>
    %296 = vector.broadcast %61 : f32 to vector<8x128xf32>
    %297 = arith.mulf %205, %296 : vector<8x128xf32>
    %298 = arith.addf %295, %297 : vector<8x128xf32>
    %299 = vector.broadcast %64 : f32 to vector<8x128xf32>
    %300 = arith.mulf %232, %299 : vector<8x128xf32>
    %301 = arith.addf %298, %300 : vector<8x128xf32>
    %302 = vector.broadcast %67 : f32 to vector<8x128xf32>
    %303 = arith.mulf %259, %302 : vector<8x128xf32>
    %304 = arith.addf %301, %303 : vector<8x128xf32>
    %305 = vector.broadcast %70 : f32 to vector<8x128xf32>
    %306 = arith.addf %304, %305 : vector<8x128xf32>
    %c2_19 = arith.constant 2 : index
    %307 = arith.index_cast %72 : i32 to index
    %c0_20 = arith.constant 0 : index
    %308 = vector.load %arg3[%c2_19, %307, %c0_20] : memref<3x8x128xf32, #tpu.memory_space<vmem>>, vector<1x8x128xf32>
    %309 = vector.shape_cast %308 : vector<1x8x128xf32> to vector<8x128xf32>
    %310 = vector.shape_cast %306 : vector<8x128xf32> to vector<1x8x128xf32>
    tpu.vector_store %arg3[%c2_19, %307, %c0_20], %310 {strides = array<i32>} : memref<3x8x128xf32, #tpu.memory_space<vmem>>, vector<1x8x128xf32>,
    %c1_i32 = arith.constant 1 : i32
    return
  }
  func.func @transform_0(%arg0: i32) -> (i32, i32, i32) {
    %c0_i32 = arith.constant 0 : i32
    %c0_i32_0 = arith.constant 0 : i32
    %c0_i32_1 = arith.constant 0 : i32
    return %c0_i32, %arg0, %c0_i32_0 : i32, i32, i32
  }
  func.func @transform_1(%arg0: i32) -> i32 {
    %c0_i32 = arith.constant 0 : i32
    %c0_i32_0 = arith.constant 0 : i32
    return %c0_i32 : i32
  }
  func.func @transform_2(%arg0: i32) -> (i32, i32, i32) {
    %c0_i32 = arith.constant 0 : i32
    %c0_i32_0 = arith.constant 0 : i32
    %c0_i32_1 = arith.constant 0 : i32
    return %c0_i32, %arg0, %c0_i32_0 : i32, i32, i32
  }
}

</mosaic_0001>

<llo_original>
// kernel: tpu_custom_call.1
$region0: #{tpu_custom_call.1}
  #allocation0 [shape = 'u32[]', space=smem, size = 0x4, offset = 0x4, fixed_abs, tag = 'smem constant byte address 0x4 - core index']
  #allocation1 [shape = 'u32[144,128]{1,0:T(1,128)}', space=vmem, size = 0x12000, scoped, tag = 'internal scratch']
  %s0 = inlined_call_operand.hbm [shape: f32[4,8,128], index: 0, kind: input, shape index: {}]
  %s1 = inlined_call_operand.vmem [shape: f32[128], index: 1, kind: input, shape index: {}]
  %s2 = inlined_call_operand.hbm [shape: f32[3,8,128], index: 2, kind: output, shape index: {}]
  %s3 = sld [smem:[#allocation0]]
  $region26: #{tpu_custom_call.1} parent=0
    _
  %s5 = ssub.s32 1, %s3
  %s6 = scalar_select 0, %s5, %s3
  $region1: #{tpu_custom_call.1} parent=0
    #allocation2 [shape = 'u8[16384]{0}', space=vmem, size = 0x4000, scoped, tag = 'input window, operand 0, single buffered']
    #allocation3 [shape = 's32[1]{0}', space=sflag, size = 0x4, scoped, tag = 'scoped memory for tpu_custom_call.1']
    #allocation4 [shape = 's32[1]{0}', space=sflag, size = 0x4, scoped, tag = 'scoped memory for tpu_custom_call.1']
    #allocation5 [shape = 's32[1]{0}', space=sflag, size = 0x4, scoped, tag = 'scoped memory for tpu_custom_call.1']
    #allocation6 [shape = 'u8[512]{0}', space=smem, size = 0x200, scoped, tag = 'input window, operand 1, single buffered']
    #allocation7 [shape = 'u8[12288]{0}', space=vmem, size = 0x3000, scoped, tag = 'output window, operand 0, single buffered']
    %7 = vsyncpa [#allocation3], 0
    %8 = vsyncpa [#allocation5], 0
    %9 = vsyncpa [#allocation4], 0
    // Predicated region
    $region2: #{tpu_custom_call.1} parent=1 // pred_check
      _
    $region3: #{tpu_custom_call.1} parent=1 // pred_check_branch
      %11 = sbr.rel (0) target = $region5
    $region4: #{tpu_custom_call.1} parent=1 // pred_region
      %s13 = ssub.s32 512, 512
      %14 = vsyncadd [#allocation3], %s13
      %s15 = sshll.u32 [#allocation2], 4
      %s16 = int_to_ptr.vmem [resolvable:$true] %s15
      %21 = dma.hbm_to_vmem [thread:$0]  %s0, 512, %s16, [#allocation3], 128, 128, 8
    $region5: #{tpu_custom_call.1} parent=1 // pred_fallthru
      _
    // Predicated region
    $region6: #{tpu_custom_call.1} parent=1 // pred_check
      _
    $region7: #{tpu_custom_call.1} parent=1 // pred_check_branch
      %23 = sbr.rel (0) target = $region9
    $region8: #{tpu_custom_call.1} parent=1 // pred_region
      %s25 = ssub.s32 16, 16
      %26 = vsyncadd [#allocation5], %s25
      %s28 = sshll.u32 %s1, 4
      %s29 = int_to_ptr.vmem [resolvable:$true] %s28
      %31 = dma.vmem_to_smem %s29, 16, [#allocation6], [#allocation5]
    $region9: #{tpu_custom_call.1} parent=1 // pred_fallthru
      _
    // Predicated region
    $region10: #{tpu_custom_call.1} parent=1 // pred_check
      _
    $region11: #{tpu_custom_call.1} parent=1 // pred_check_branch
      %33 = sbr.rel (0) target = $region13
    $region12: #{tpu_custom_call.1} parent=1 // pred_region
      %34 = dma.done [#allocation3], 512
    $region13: #{tpu_custom_call.1} parent=1 // pred_fallthru
      _
    // Predicated region
    $region14: #{tpu_custom_call.1} parent=1 // pred_check
      _
    $region15: #{tpu_custom_call.1} parent=1 // pred_check_branch
      %36 = sbr.rel (0) target = $region17
    $region16: #{tpu_custom_call.1} parent=1 // pred_region
      %37 = dma.done [#allocation5], 16
    $region17: #{tpu_custom_call.1} parent=1 // pred_fallthru
      _
    %38 = sfence
    %s39 = sld [smem:[#allocation6]]
    %s40 = sld [smem:[#allocation6 + $0x1]]
    %s41 = sld [smem:[#allocation6 + $0x2]]
    %s42 = sld [smem:[#allocation6 + $0x3]]
    %s43 = sld [smem:[#allocation6 + $0x4]]
    %s44 = sld [smem:[#allocation6 + $0x5]]
    %s45 = sld [smem:[#allocation6 + $0x6]]
    %s46 = sld [smem:[#allocation6 + $0x7]]
    %s47 = sld [smem:[#allocation6 + $0x8]]
    %s48 = sld [smem:[#allocation6 + $0x9]]
    %s49 = sld [smem:[#allocation6 + $0xa]]
    %s50 = sld [smem:[#allocation6 + $0xb]]
    %s51 = sld [smem:[#allocation6 + $0xc]]
    %s52 = sld [smem:[#allocation6 + $0xd]]
    %s53 = sld [smem:[#allocation6 + $0xe]]
    %s54 = sld [smem:[#allocation6 + $0xf]]
    %s55 = sld [smem:[#allocation6 + $0x10]]
    %s56 = sld [smem:[#allocation6 + $0x11]]
    %s57 = sld [smem:[#allocation6 + $0x12]]
    %s58 = sld [smem:[#allocation6 + $0x13]]
    %s59 = sld [smem:[#allocation6 + $0x14]]
    %s60 = sld [smem:[#allocation6 + $0x15]]
    %s61 = sld [smem:[#allocation6 + $0x16]]
    %s62 = sld [smem:[#allocation6 + $0x17]]
    %s63 = sld [smem:[#allocation6 + $0x18]]
    %s64 = sld [smem:[#allocation6 + $0x19]]
    %s65 = sld [smem:[#allocation6 + $0x1a]]
    %s66 = sld [smem:[#allocation6 + $0x1b]]
    %s67 = sld [smem:[#allocation6 + $0x1c]]
    %s68 = sld [smem:[#allocation6 + $0x1d]]
    %s69 = sld [smem:[#allocation6 + $0x1e]]
    %s70 = sld [smem:[#allocation6 + $0x1f]]
    %s71 = sld [smem:[#allocation6 + $0x20]]
    %s72 = sld [smem:[#allocation6 + $0x21]]
    %s73 = sld [smem:[#allocation6 + $0x22]]
    %s74 = sld [smem:[#allocation6 + $0x23]]
    %s75 = sld [smem:[#allocation6 + $0x24]]
    %s76 = sld [smem:[#allocation6 + $0x25]]
    %s77 = sld [smem:[#allocation6 + $0x26]]
    %s78 = sld [smem:[#allocation6 + $0x27]]
    %s79 = sld [smem:[#allocation6 + $0x28]]
    %s80 = sld [smem:[#allocation6 + $0x29]]
    %s81 = sld [smem:[#allocation6 + $0x2a]]
    %s82 = sld [smem:[#allocation6 + $0x2b]]
    %s83 = sld [smem:[#allocation6 + $0x2c]]
    %s84 = sld [smem:[#allocation6 + $0x2d]]
    %s85 = sld [smem:[#allocation6 + $0x2e]]
    %s86 = sld [smem:[#allocation6 + $0x2f]]
    %s87 = sld [smem:[#allocation6 + $0x30]]
    %s88 = sld [smem:[#allocation6 + $0x31]]
    %s89 = sld [smem:[#allocation6 + $0x32]]
    %s90 = sld [smem:[#allocation6 + $0x33]]
    %s91 = sld [smem:[#allocation6 + $0x34]]
    %s92 = sld [smem:[#allocation6 + $0x35]]
    %s93 = sld [smem:[#allocation6 + $0x36]]
    %s94 = sld [smem:[#allocation6 + $0x37]]
    %s95 = sld [smem:[#allocation6 + $0x38]]
    %s96 = sld [smem:[#allocation6 + $0x39]]
    %s97 = sld [smem:[#allocation6 + $0x3a]]
    %s98 = sld [smem:[#allocation6 + $0x3b]]
    %s99 = sld [smem:[#allocation6 + $0x3c]]
    %s100 = sld [smem:[#allocation6 + $0x3d]]
    %s101 = sld [smem:[#allocation6 + $0x3e]]
    %s102 = sld [smem:[#allocation6 + $0x3f]]
    %s103 = sld [smem:[#allocation6 + $0x40]]
    %s104 = sld [smem:[#allocation6 + $0x41]]
    %s105 = sld [smem:[#allocation6 + $0x42]]
    %s106 = sld [smem:[#allocation6 + $0x43]]
    %s107 = sld [smem:[#allocation6 + $0x44]]
    %s108 = sld [smem:[#allocation6 + $0x45]]
    %s109 = sld [smem:[#allocation6 + $0x46]]
    %v110 = vld [vmem:[#allocation2] sm:$0xff]
    %s111 = sadd.s32 0, 8
    %s112 = scalar_lea.vmem [#allocation2], %s111
    %v113 = vld [vmem:[%s112] sm:$0xff]
    %s114 = sadd.s32 0, 16
    %s115 = scalar_lea.vmem [#allocation2], %s114
    %v116 = vld [vmem:[%s115] sm:$0xff]
    %s117 = sadd.s32 0, 24
    %s118 = scalar_lea.vmem [#allocation2], %s117
    %v119 = vld [vmem:[%s118] sm:$0xff]
    %v120 = vand.u32 2147483647, %v110
    %vm121 = vcmp.le.f32.partialorder %v120, 0.7853982
    %vm122 = vcmp.lt.s32.totalorder %v110, 0
    %v123 = vand.u32 %v110, 2139095040
    %v124 = vshrl.u32 %v123, 23
    %v125 = vsub.s32 %v124, 127
    %v126 = vand.u32 2147483647, %v110
    %v127 = vand.u32 %v126, 8388607
    %v128 = vor.u32 %v127, 8388608
    %v129 = vsub.s32 0, %v128
    %v130 = vadd.s32 %v125, 1
    %vm131 = vcmp.gt.s32.totalorder %v130, 0
    %v132 = vsel %vm131, %v130, 0
    %v133 = vshrl.u32 %v132, 5
    %v134 = vand.u32 %v132, 31
    %v135 = vsub.s32 32, %v134
    %v136 = vshrl.u32 683565275, %v135
    %v137 = vshll.u32 683565275, %v134
    %v138 = vshrl.u32 2475754826, %v135
    %v139 = vor.u32 %v137, %v138
    %v140 = vshll.u32 2475754826, %v134
    %v141 = vshrl.u32 2131351028, %v135
    %v142 = vor.u32 %v140, %v141
    %v143 = vshll.u32 2131351028, %v134
    %v144 = vshrl.u32 2102212464, %v135
    %v145 = vor.u32 %v143, %v144
    %v146 = vshll.u32 2102212464, %v134
    %v147 = vshrl.u32 920167782, %v135
    %v148 = vor.u32 %v146, %v147
    %v149 = vshll.u32 920167782, %v134
    %v150 = vshrl.u32 1326507024, %v135
    %v151 = vor.u32 %v149, %v150
    %vm152 = vcmp.lt.s32.totalorder %v133, 1
    %vm153 = vcmp.lt.s32.totalorder %v133, 2
    %vm154 = vcmp.lt.s32.totalorder %v133, 3
    %vm155 = vcmp.lt.s32.totalorder %v133, 4
    %v156 = vsel %vm152, %v136, %v139
    %v157 = vsel %vm155, %v145, 2102212464
    %v158 = vsel %vm154, %v142, %v157
    %v159 = vsel %vm153, %v156, %v158
    %v160 = vsel %vm152, %v139, %v142
    %v161 = vsel %vm155, %v148, 920167782
    %v162 = vsel %vm154, %v145, %v161
    %v163 = vsel %vm153, %v160, %v162
    %v164 = vsel %vm152, %v142, %v145
    %v165 = vsel %vm155, %v151, 1326507024
    %v166 = vsel %vm154, %v148, %v165
    %v167 = vsel %vm153, %v164, %v166
    %v168 = vshll.u32 %v128, 8
    %v169 = vmul.u32.u64.compose %v168, %v167
    %v170 = vextract.low.u32 %v169
    %v171 = vextract.high.u32 %v169
    %v172 = vmul.u32.u64.compose %v168, %v163
    %v173 = vextract.low.u32 %v172
    %v174 = vextract.high.u32 %v172
    %v175 = vmul.u32 %v168, %v159
    %v176 = vadd.s32 %v171, %v173
    %vm177 = vc.u32 %v171, %v173
    %v178 = vadd.s32 %v174, 1
    %v179 = vsel %vm177, %v178, %v174
    %v180 = vadd.s32 %v175, %v179
    %v181 = vadd.s32 %v180, 536870912
    %v182 = vshrl.u32 %v181, 30
    %v183 = vshll.u32 %v182, 30
    %v184 = vsub.s32 %v180, %v183
    %vm185 = vcmp.lt.s32.totalorder %v184, 0
    %v186 = vsub.s32 0, %v184
    %v187 = vsel %vm185, %v186, %v184
    %v188 = vclz %v187
    %v189 = vsub.s32 %v188, 2
    %vm190 = vcmp.gt.s32.totalorder 0, %v189
    %v191 = vsel %vm190, 0, %v189
    %v192 = vsub.s32 32, %v191
    %v193 = vshll.u32 %v184, %v191
    %v194 = vshrl.u32 %v176, %v192
    %v195 = vor.u32 %v193, %v194
    %v196 = vsub.s32 4294967266, %v191
    %v197 = vadd.s32 %v196, 127
    %v198 = vshll.u32 %v197, 23
    %v199 = vor.u32 4788187, %v198
    %v200 = vand.u32 2147483647, %v199
    %v202 = vcvt.s32.f32 %v195
    %v203 = vmul.f32 %v202, %v200
    %v204 = vxor.u32 %v203, 2147483648
    %v205 = vsel %vm122, %v204, %v203
    %v206 = vsub.s32 4, %v182
    %v207 = vsel %vm122, %v206, %v182
    %v208 = vsel %vm121, %v110, %v205
    %v209 = vsel %vm121, 0, %v207
    %v210 = vcosq.f32.pop %v208
    %v211 = vsinq.f32.pop %v208
    %vm212 = vweird.f32 %v110
    %v213 = vand.u32 %v209, 3
    %vm214 = vcmp.lt.s32.totalorder %v213, 2
    %vm215 = vcmp.eq.s32.totalorder %v213, 0
    %v216 = vxor.u32 %v211, 2147483648
    %v217 = vsel %vm215, %v210, %v216
    %vm218 = vcmp.eq.s32.totalorder %v213, 2
    %v219 = vxor.u32 %v210, 2147483648
    %v220 = vsel %vm218, %v219, %v211
    %v221 = vsel %vm214, %v217, %v220
    %v222 = vsel %vm212, nan, %v221
    %v223 = vand.u32 2147483647, %v113
    %vm224 = vcmp.le.f32.partialorder %v223, 0.7853982
    %vm225 = vcmp.lt.s32.totalorder %v113, 0
    %v226 = vand.u32 %v113, 2139095040
    %v227 = vshrl.u32 %v226, 23
    %v228 = vsub.s32 %v227, 127
    %v229 = vand.u32 2147483647, %v113
    %v230 = vand.u32 %v229, 8388607
    %v231 = vor.u32 %v230, 8388608
    %v232 = vsub.s32 0, %v231
    %v233 = vadd.s32 %v228, 1
    %vm234 = vcmp.gt.s32.totalorder %v233, 0
    %v235 = vsel %vm234, %v233, 0
    %v236 = vshrl.u32 %v235, 5
    %v237 = vand.u32 %v235, 31
    %v238 = vsub.s32 32, %v237
    %v239 = vshrl.u32 683565275, %v238
    %v240 = vshll.u32 683565275, %v237
    %v241 = vshrl.u32 2475754826, %v238
    %v242 = vor.u32 %v240, %v241
    %v243 = vshll.u32 2475754826, %v237
    %v244 = vshrl.u32 2131351028, %v238
    %v245 = vor.u32 %v243, %v244
    %v246 = vshll.u32 2131351028, %v237
    %v247 = vshrl.u32 2102212464, %v238
    %v248 = vor.u32 %v246, %v247
    %v249 = vshll.u32 2102212464, %v237
    %v250 = vshrl.u32 920167782, %v238
    %v251 = vor.u32 %v249, %v250
    %v252 = vshll.u32 920167782, %v237
    %v253 = vshrl.u32 1326507024, %v238
    %v254 = vor.u32 %v252, %v253
    %vm255 = vcmp.lt.s32.totalorder %v236, 1
    %vm256 = vcmp.lt.s32.totalorder %v236, 2
    %vm257 = vcmp.lt.s32.totalorder %v236, 3
    %vm258 = vcmp.lt.s32.totalorder %v236, 4
    %v259 = vsel %vm255, %v239, %v242
    %v260 = vsel %vm258, %v248, 2102212464
    %v261 = vsel %vm257, %v245, %v260
    %v262 = vsel %vm256, %v259, %v261
    %v263 = vsel %vm255, %v242, %v245
    %v264 = vsel %vm258, %v251, 920167782
    %v265 = vsel %vm257, %v248, %v264
    %v266 = vsel %vm256, %v263, %v265
    %v267 = vsel %vm255, %v245, %v248
    %v268 = vsel %vm258, %v254, 1326507024
    %v269 = vsel %vm257, %v251, %v268
    %v270 = vsel %vm256, %v267, %v269
    %v271 = vshll.u32 %v231, 8
    %v272 = vmul.u32.u64.compose %v271, %v270
    %v273 = vextract.low.u32 %v272
    %v274 = vextract.high.u32 %v272
    %v275 = vmul.u32.u64.compose %v271, %v266
    %v276 = vextract.low.u32 %v275
    %v277 = vextract.high.u32 %v275
    %v278 = vmul.u32 %v271, %v262
    %v279 = vadd.s32 %v274, %v276
    %vm280 = vc.u32 %v274, %v276
    %v281 = vadd.s32 %v277, 1
    %v282 = vsel %vm280, %v281, %v277
    %v283 = vadd.s32 %v278, %v282
    %v284 = vadd.s32 %v283, 536870912
    %v285 = vshrl.u32 %v284, 30
    %v286 = vshll.u32 %v285, 30
    %v287 = vsub.s32 %v283, %v286
    %vm288 = vcmp.lt.s32.totalorder %v287, 0
    %v289 = vsub.s32 0, %v287
    %v290 = vsel %vm288, %v289, %v287
    %v291 = vclz %v290
    %v292 = vsub.s32 %v291, 2
    %vm293 = vcmp.gt.s32.totalorder 0, %v292
    %v294 = vsel %vm293, 0, %v292
    %v295 = vsub.s32 32, %v294
    %v296 = vshll.u32 %v287, %v294
    %v297 = vshrl.u32 %v279, %v295
    %v298 = vor.u32 %v296, %v297
    %v299 = vsub.s32 4294967266, %v294
    %v300 = vadd.s32 %v299, 127
    %v301 = vshll.u32 %v300, 23
    %v302 = vor.u32 4788187, %v301
    %v303 = vand.u32 2147483647, %v302
    %v305 = vcvt.s32.f32 %v298
    %v306 = vmul.f32 %v305, %v303
    %v307 = vxor.u32 %v306, 2147483648
    %v308 = vsel %vm225, %v307, %v306
    %v309 = vsub.s32 4, %v285
    %v310 = vsel %vm225, %v309, %v285
    %v311 = vsel %vm224, %v113, %v308
    %v312 = vsel %vm224, 0, %v310
    %v313 = vcosq.f32.pop %v311
    %v314 = vsinq.f32.pop %v311
    %vm315 = vweird.f32 %v113
    %v316 = vand.u32 %v312, 3
    %vm317 = vcmp.lt.s32.totalorder %v316, 2
    %vm318 = vcmp.eq.s32.totalorder %v316, 0
    %v319 = vxor.u32 %v314, 2147483648
    %v320 = vsel %vm318, %v313, %v319
    %vm321 = vcmp.eq.s32.totalorder %v316, 2
    %v322 = vxor.u32 %v313, 2147483648
    %v323 = vsel %vm321, %v322, %v314
    %v324 = vsel %vm317, %v320, %v323
    %v325 = vsel %vm315, nan, %v324
    %v326 = vand.u32 2147483647, %v116
    %vm327 = vcmp.le.f32.partialorder %v326, 0.7853982
    %vm328 = vcmp.lt.s32.totalorder %v116, 0
    %v329 = vand.u32 %v116, 2139095040
    %v330 = vshrl.u32 %v329, 23
    %v331 = vsub.s32 %v330, 127
    %v332 = vand.u32 2147483647, %v116
    %v333 = vand.u32 %v332, 8388607
    %v334 = vor.u32 %v333, 8388608
    %v335 = vsub.s32 0, %v334
    %v336 = vadd.s32 %v331, 1
    %vm337 = vcmp.gt.s32.totalorder %v336, 0
    %v338 = vsel %vm337, %v336, 0
    %v339 = vshrl.u32 %v338, 5
    %v340 = vand.u32 %v338, 31
    %v341 = vsub.s32 32, %v340
    %v342 = vshrl.u32 683565275, %v341
    %v343 = vshll.u32 683565275, %v340
    %v344 = vshrl.u32 2475754826, %v341
    %v345 = vor.u32 %v343, %v344
    %v346 = vshll.u32 2475754826, %v340
    %v347 = vshrl.u32 2131351028, %v341
    %v348 = vor.u32 %v346, %v347
    %v349 = vshll.u32 2131351028, %v340
    %v350 = vshrl.u32 2102212464, %v341
    %v351 = vor.u32 %v349, %v350
    %v352 = vshll.u32 2102212464, %v340
    %v353 = vshrl.u32 920167782, %v341
    %v354 = vor.u32 %v352, %v353
    %v355 = vshll.u32 920167782, %v340
    %v356 = vshrl.u32 1326507024, %v341
    %v357 = vor.u32 %v355, %v356
    %vm358 = vcmp.lt.s32.totalorder %v339, 1
    %vm359 = vcmp.lt.s32.totalorder %v339, 2
    %vm360 = vcmp.lt.s32.totalorder %v339, 3
    %vm361 = vcmp.lt.s32.totalorder %v339, 4
    %v362 = vsel %vm358, %v342, %v345
    %v363 = vsel %vm361, %v351, 2102212464
    %v364 = vsel %vm360, %v348, %v363
    %v365 = vsel %vm359, %v362, %v364
    %v366 = vsel %vm358, %v345, %v348
    %v367 = vsel %vm361, %v354, 920167782
    %v368 = vsel %vm360, %v351, %v367
    %v369 = vsel %vm359, %v366, %v368
    %v370 = vsel %vm358, %v348, %v351
    %v371 = vsel %vm361, %v357, 1326507024
    %v372 = vsel %vm360, %v354, %v371
    %v373 = vsel %vm359, %v370, %v372
    %v374 = vshll.u32 %v334, 8
    %v375 = vmul.u32.u64.compose %v374, %v373
    %v376 = vextract.low.u32 %v375
    %v377 = vextract.high.u32 %v375
    %v378 = vmul.u32.u64.compose %v374, %v369
    %v379 = vextract.low.u32 %v378
    %v380 = vextract.high.u32 %v378
    %v381 = vmul.u32 %v374, %v365
    %v382 = vadd.s32 %v377, %v379
    %vm383 = vc.u32 %v377, %v379
    %v384 = vadd.s32 %v380, 1
    %v385 = vsel %vm383, %v384, %v380
    %v386 = vadd.s32 %v381, %v385
    %v387 = vadd.s32 %v386, 536870912
    %v388 = vshrl.u32 %v387, 30
    %v389 = vshll.u32 %v388, 30
    %v390 = vsub.s32 %v386, %v389
    %vm391 = vcmp.lt.s32.totalorder %v390, 0
    %v392 = vsub.s32 0, %v390
    %v393 = vsel %vm391, %v392, %v390
    %v394 = vclz %v393
    %v395 = vsub.s32 %v394, 2
    %vm396 = vcmp.gt.s32.totalorder 0, %v395
    %v397 = vsel %vm396, 0, %v395
    %v398 = vsub.s32 32, %v397
    %v399 = vshll.u32 %v390, %v397
    %v400 = vshrl.u32 %v382, %v398
    %v401 = vor.u32 %v399, %v400
    %v402 = vsub.s32 4294967266, %v397
    %v403 = vadd.s32 %v402, 127
    %v404 = vshll.u32 %v403, 23
    %v405 = vor.u32 4788187, %v404
    %v406 = vand.u32 2147483647, %v405
    %v408 = vcvt.s32.f32 %v401
    %v409 = vmul.f32 %v408, %v406
    %v410 = vxor.u32 %v409, 2147483648
    %v411 = vsel %vm328, %v410, %v409
    %v412 = vsub.s32 4, %v388
    %v413 = vsel %vm328, %v412, %v388
    %v414 = vsel %vm327, %v116, %v411
    %v415 = vsel %vm327, 0, %v413
    %v416 = vcosq.f32.pop %v414
    %v417 = vsinq.f32.pop %v414
    %vm418 = vweird.f32 %v116
    %v419 = vand.u32 %v415, 3
    %vm420 = vcmp.lt.s32.totalorder %v419, 2
    %vm421 = vcmp.eq.s32.totalorder %v419, 0
    %v422 = vxor.u32 %v417, 2147483648
    %v423 = vsel %vm421, %v416, %v422
    %vm424 = vcmp.eq.s32.totalorder %v419, 2
    %v425 = vxor.u32 %v416, 2147483648
    %v426 = vsel %vm424, %v425, %v417
    %v427 = vsel %vm420, %v423, %v426
    %v428 = vsel %vm418, nan, %v427
    %v429 = vand.u32 2147483647, %v119
    %vm430 = vcmp.le.f32.partialorder %v429, 0.7853982
    %vm431 = vcmp.lt.s32.totalorder %v119, 0
    %v432 = vand.u32 %v119, 2139095040
    %v433 = vshrl.u32 %v432, 23
    %v434 = vsub.s32 %v433, 127
    %v435 = vand.u32 2147483647, %v119
    %v436 = vand.u32 %v435, 8388607
    %v437 = vor.u32 %v436, 8388608
    %v438 = vsub.s32 0, %v437
    %v439 = vadd.s32 %v434, 1
    %vm440 = vcmp.gt.s32.totalorder %v439, 0
    %v441 = vsel %vm440, %v439, 0
    %v442 = vshrl.u32 %v441, 5
    %v443 = vand.u32 %v441, 31
    %v444 = vsub.s32 32, %v443
    %v445 = vshrl.u32 683565275, %v444
    %v446 = vshll.u32 683565275, %v443
    %v447 = vshrl.u32 2475754826, %v444
    %v448 = vor.u32 %v446, %v447
    %v449 = vshll.u32 2475754826, %v443
    %v450 = vshrl.u32 2131351028, %v444
    %v451 = vor.u32 %v449, %v450
    %v452 = vshll.u32 2131351028, %v443
    %v453 = vshrl.u32 2102212464, %v444
    %v454 = vor.u32 %v452, %v453
    %v455 = vshll.u32 2102212464, %v443
    %v456 = vshrl.u32 920167782, %v444
    %v457 = vor.u32 %v455, %v456
    %v458 = vshll.u32 920167782, %v443
    %v459 = vshrl.u32 1326507024, %v444
    %v460 = vor.u32 %v458, %v459
    %vm461 = vcmp.lt.s32.totalorder %v442, 1
    %vm462 = vcmp.lt.s32.totalorder %v442, 2
    %vm463 = vcmp.lt.s32.totalorder %v442, 3
    %vm464 = vcmp.lt.s32.totalorder %v442, 4
    %v465 = vsel %vm461, %v445, %v448
    %v466 = vsel %vm464, %v454, 2102212464
    %v467 = vsel %vm463, %v451, %v466
    %v468 = vsel %vm462, %v465, %v467
    %v469 = vsel %vm461, %v448, %v451
    %v470 = vsel %vm464, %v457, 920167782
    %v471 = vsel %vm463, %v454, %v470
    %v472 = vsel %vm462, %v469, %v471
    %v473 = vsel %vm461, %v451, %v454
    %v474 = vsel %vm464, %v460, 1326507024
    %v475 = vsel %vm463, %v457, %v474
    %v476 = vsel %vm462, %v473, %v475
    %v477 = vshll.u32 %v437, 8
    %v478 = vmul.u32.u64.compose %v477, %v476
    %v479 = vextract.low.u32 %v478
    %v480 = vextract.high.u32 %v478
    %v481 = vmul.u32.u64.compose %v477, %v472
    %v482 = vextract.low.u32 %v481
    %v483 = vextract.high.u32 %v481
    %v484 = vmul.u32 %v477, %v468
    %v485 = vadd.s32 %v480, %v482
    %vm486 = vc.u32 %v480, %v482
    %v487 = vadd.s32 %v483, 1
    %v488 = vsel %vm486, %v487, %v483
    %v489 = vadd.s32 %v484, %v488
    %v490 = vadd.s32 %v489, 536870912
    %v491 = vshrl.u32 %v490, 30
    %v492 = vshll.u32 %v491, 30
    %v493 = vsub.s32 %v489, %v492
    %vm494 = vcmp.lt.s32.totalorder %v493, 0
    %v495 = vsub.s32 0, %v493
    %v496 = vsel %vm494, %v495, %v493
    %v497 = vclz %v496
    %v498 = vsub.s32 %v497, 2
    %vm499 = vcmp.gt.s32.totalorder 0, %v498
    %v500 = vsel %vm499, 0, %v498
    %v501 = vsub.s32 32, %v500
    %v502 = vshll.u32 %v493, %v500
    %v503 = vshrl.u32 %v485, %v501
    %v504 = vor.u32 %v502, %v503
    %v505 = vsub.s32 4294967266, %v500
    %v506 = vadd.s32 %v505, 127
    %v507 = vshll.u32 %v506, 23
    %v508 = vor.u32 4788187, %v507
    %v509 = vand.u32 2147483647, %v508
    %v511 = vcvt.s32.f32 %v504
    %v512 = vmul.f32 %v511, %v509
    %v513 = vxor.u32 %v512, 2147483648
    %v514 = vsel %vm431, %v513, %v512
    %v515 = vsub.s32 4, %v491
    %v516 = vsel %vm431, %v515, %v491
    %v517 = vsel %vm430, %v119, %v514
    %v518 = vsel %vm430, 0, %v516
    %v519 = vcosq.f32.pop %v517
    %v520 = vsinq.f32.pop %v517
    %vm521 = vweird.f32 %v119
    %v522 = vand.u32 %v518, 3
    %vm523 = vcmp.lt.s32.totalorder %v522, 2
    %vm524 = vcmp.eq.s32.totalorder %v522, 0
    %v525 = vxor.u32 %v520, 2147483648
    %v526 = vsel %vm524, %v519, %v525
    %vm527 = vcmp.eq.s32.totalorder %v522, 2
    %v528 = vxor.u32 %v519, 2147483648
    %v529 = vsel %vm527, %v528, %v520
    %v530 = vsel %vm523, %v526, %v529
    %v531 = vsel %vm521, nan, %v530
    %v532 = vmul.f32 %v222, %v325
    %v533 = vmul.f32 %v532, %v428
    %v534 = vmul.f32 %v533, %v531
    %v535 = vstv %s39
    %v536 = vmul.f32 %v110, %v535
    %v537 = vstv %s43
    %v538 = vmul.f32 %v113, %v537
    %v539 = vadd.f32 %v536, %v538
    %v540 = vstv %s47
    %v541 = vmul.f32 %v116, %v540
    %v542 = vadd.f32 %v539, %v541
    %v543 = vstv %s51
    %v544 = vmul.f32 %v119, %v543
    %v545 = vadd.f32 %v542, %v544
    %v546 = vstv %s55
    %v547 = vadd.f32 %v545, %v546
    %v548 = vmax.f32 %v547, 0.0
    %v549 = vstv %s40
    %v550 = vmul.f32 %v110, %v549
    %v551 = vstv %s44
    %v552 = vmul.f32 %v113, %v551
    %v553 = vadd.f32 %v550, %v552
    %v554 = vstv %s48
    %v555 = vmul.f32 %v116, %v554
    %v556 = vadd.f32 %v553, %v555
    %v557 = vstv %s52
    %v558 = vmul.f32 %v119, %v557
    %v559 = vadd.f32 %v556, %v558
    %v560 = vstv %s56
    %v561 = vadd.f32 %v559, %v560
    %v562 = vmax.f32 %v561, 0.0
    %v563 = vstv %s41
    %v564 = vmul.f32 %v110, %v563
    %v565 = vstv %s45
    %v566 = vmul.f32 %v113, %v565
    %v567 = vadd.f32 %v564, %v566
    %v568 = vstv %s49
    %v569 = vmul.f32 %v116, %v568
    %v570 = vadd.f32 %v567, %v569
    %v571 = vstv %s53
    %v572 = vmul.f32 %v119, %v571
    %v573 = vadd.f32 %v570, %v572
    %v574 = vstv %s57
    %v575 = vadd.f32 %v573, %v574
    %v576 = vmax.f32 %v575, 0.0
    %v577 = vstv %s42
    %v578 = vmul.f32 %v110, %v577
    %v579 = vstv %s46
    %v580 = vmul.f32 %v113, %v579
    %v581 = vadd.f32 %v578, %v580
    %v582 = vstv %s50
    %v583 = vmul.f32 %v116, %v582
    %v584 = vadd.f32 %v581, %v583
    %v585 = vstv %s54
    %v586 = vmul.f32 %v119, %v585
    %v587 = vadd.f32 %v584, %v586
    %v588 = vstv %s58
    %v589 = vadd.f32 %v587, %v588
    %v590 = vmax.f32 %v589, 0.0
    %v591 = vstv %s59
    %v592 = vmul.f32 %v548, %v591
    %v593 = vstv %s63
    %v594 = vmul.f32 %v562, %v593
    %v595 = vadd.f32 %v592, %v594
    %v596 = vstv %s67
    %v597 = vmul.f32 %v576, %v596
    %v598 = vadd.f32 %v595, %v597
    %v599 = vstv %s71
    %v600 = vmul.f32 %v590, %v599
    %v601 = vadd.f32 %v598, %v600
    %v602 = vstv %s75
    %v603 = vmul.f32 %v222, %v602
    %v604 = vadd.f32 %v601, %v603
    %v605 = vstv %s79
    %v606 = vmul.f32 %v532, %v605
    %v607 = vadd.f32 %v604, %v606
    %v608 = vstv %s83
    %v609 = vmul.f32 %v533, %v608
    %v610 = vadd.f32 %v607, %v609
    %v611 = vstv %s87
    %v612 = vmul.f32 %v534, %v611
    %v613 = vadd.f32 %v610, %v612
    %v614 = vstv %s91
    %v615 = vadd.f32 %v613, %v614
    %v616 = vmax.f32 %v615, 0.0
    %v617 = vstv %s60
    %v618 = vmul.f32 %v548, %v617
    %v619 = vstv %s64
    %v620 = vmul.f32 %v562, %v619
    %v621 = vadd.f32 %v618, %v620
    %v622 = vstv %s68
    %v623 = vmul.f32 %v576, %v622
    %v624 = vadd.f32 %v621, %v623
    %v625 = vstv %s72
    %v626 = vmul.f32 %v590, %v625
    %v627 = vadd.f32 %v624, %v626
    %v628 = vstv %s76
    %v629 = vmul.f32 %v222, %v628
    %v630 = vadd.f32 %v627, %v629
    %v631 = vstv %s80
    %v632 = vmul.f32 %v532, %v631
    %v633 = vadd.f32 %v630, %v632
    %v634 = vstv %s84
    %v635 = vmul.f32 %v533, %v634
    %v636 = vadd.f32 %v633, %v635
    %v637 = vstv %s88
    %v638 = vmul.f32 %v534, %v637
    %v639 = vadd.f32 %v636, %v638
    %v640 = vstv %s92
    %v641 = vadd.f32 %v639, %v640
    %v642 = vmax.f32 %v641, 0.0
    %v643 = vstv %s61
    %v644 = vmul.f32 %v548, %v643
    %v645 = vstv %s65
    %v646 = vmul.f32 %v562, %v645
    %v647 = vadd.f32 %v644, %v646
    %v648 = vstv %s69
    %v649 = vmul.f32 %v576, %v648
    %v650 = vadd.f32 %v647, %v649
    %v651 = vstv %s73
    %v652 = vmul.f32 %v590, %v651
    %v653 = vadd.f32 %v650, %v652
    %v654 = vstv %s77
    %v655 = vmul.f32 %v222, %v654
    %v656 = vadd.f32 %v653, %v655
    %v657 = vstv %s81
    %v658 = vmul.f32 %v532, %v657
    %v659 = vadd.f32 %v656, %v658
    %v660 = vstv %s85
    %v661 = vmul.f32 %v533, %v660
    %v662 = vadd.f32 %v659, %v661
    %v663 = vstv %s89
    %v664 = vmul.f32 %v534, %v663
    %v665 = vadd.f32 %v662, %v664
    %v666 = vstv %s93
    %v667 = vadd.f32 %v665, %v666
    %v668 = vmax.f32 %v667, 0.0
    %v669 = vstv %s62
    %v670 = vmul.f32 %v548, %v669
    %v671 = vstv %s66
    %v672 = vmul.f32 %v562, %v671
    %v673 = vadd.f32 %v670, %v672
    %v674 = vstv %s70
    %v675 = vmul.f32 %v576, %v674
    %v676 = vadd.f32 %v673, %v675
    %v677 = vstv %s74
    %v678 = vmul.f32 %v590, %v677
    %v679 = vadd.f32 %v676, %v678
    %v680 = vstv %s78
    %v681 = vmul.f32 %v222, %v680
    %v682 = vadd.f32 %v679, %v681
    %v683 = vstv %s82
    %v684 = vmul.f32 %v532, %v683
    %v685 = vadd.f32 %v682, %v684
    %v686 = vstv %s86
    %v687 = vmul.f32 %v533, %v686
    %v688 = vadd.f32 %v685, %v687
    %v689 = vstv %s90
    %v690 = vmul.f32 %v534, %v689
    %v691 = vadd.f32 %v688, %v690
    %v692 = vstv %s94
    %v693 = vadd.f32 %v691, %v692
    %v694 = vmax.f32 %v693, 0.0
    %v695 = vstv %s95
    %v696 = vmul.f32 %v616, %v695
    %v697 = vstv %s98
    %v698 = vmul.f32 %v642, %v697
    %v699 = vadd.f32 %v696, %v698
    %v700 = vstv %s101
    %v701 = vmul.f32 %v668, %v700
    %v702 = vadd.f32 %v699, %v701
    %v703 = vstv %s104
    %v704 = vmul.f32 %v694, %v703
    %v705 = vadd.f32 %v702, %v704
    %v706 = vstv %s107
    %v707 = vadd.f32 %v705, %v706
    %708 = vst [vmem:[#allocation7] sm:$0xff] %v707
    %v709 = vstv %s96
    %v710 = vmul.f32 %v616, %v709
    %v711 = vstv %s99
    %v712 = vmul.f32 %v642, %v711
    %v713 = vadd.f32 %v710, %v712
    %v714 = vstv %s102
    %v715 = vmul.f32 %v668, %v714
    %v716 = vadd.f32 %v713, %v715
    %v717 = vstv %s105
    %v718 = vmul.f32 %v694, %v717
    %v719 = vadd.f32 %v716, %v718
    %v720 = vstv %s108
    %v721 = vadd.f32 %v719, %v720
    %s722 = scalar_lea.vmem [#allocation7], %s111
    %723 = vst [vmem:[%s722] sm:$0xff] %v721
    %v724 = vstv %s97
    %v725 = vmul.f32 %v616, %v724
    %v726 = vstv %s100
    %v727 = vmul.f32 %v642, %v726
    %v728 = vadd.f32 %v725, %v727
    %v729 = vstv %s103
    %v730 = vmul.f32 %v668, %v729
    %v731 = vadd.f32 %v728, %v730
    %v732 = vstv %s106
    %v733 = vmul.f32 %v694, %v732
    %v734 = vadd.f32 %v731, %v733
    %v735 = vstv %s109
    %v736 = vadd.f32 %v734, %v735
    %s737 = scalar_lea.vmem [#allocation7], %s114
    %738 = vst [vmem:[%s737] sm:$0xff] %v736
    // Predicated region
    $region18: #{tpu_custom_call.1} parent=1 // pred_check
      _
    $region19: #{tpu_custom_call.1} parent=1 // pred_check_branch
      %740 = sbr.rel (0) target = $region21
    $region20: #{tpu_custom_call.1} parent=1 // pred_region
      %s742 = ssub.s32 384, 384
      %743 = vsyncadd [#allocation4], %s742
      %s744 = sshll.u32 [#allocation7], 4
      %s745 = int_to_ptr.vmem [resolvable:$true] %s744
      %750 = dma.vmem_to_hbm [thread:$0]  %s745, 384, %s2, [#allocation4], 128, 128, 8
    $region21: #{tpu_custom_call.1} parent=1 // pred_fallthru
      _
    // Predicated region
    $region22: #{tpu_custom_call.1} parent=1 // pred_check
      _
    $region23: #{tpu_custom_call.1} parent=1 // pred_check_branch
      %752 = sbr.rel (0) target = $region25
    $region24: #{tpu_custom_call.1} parent=1 // pred_region
      %753 = dma.done [#allocation4], 384
    $region25: #{tpu_custom_call.1} parent=1 // pred_fallthru
      _
    %754 = vsyncpa [#allocation3], 1
    %755 = vsyncpa [#allocation4], 1
    %756 = vsyncpa [#allocation5], 1

</llo_original>
